<compile_context>
chip_gen: v7x
topology: tpu7x:2x2x1
jax: 0.10.0
libtpu: 0.0.40
codegen_flags: <defaults>
</compile_context>

<pallas_src>
import jax
import jax.numpy as jnp
from jax.experimental import pallas as pl
from jax.experimental.pallas import tpu as pltpu


def linear_kernel(w_ref, b_ref, x_ref, o_ref):
    # w_ref: SMEM (2,) f32, b_ref: SMEM (1,) f32
    # x_ref: VMEM (2, BR, 128) f32  (feature-major, batch lane-dense)
    # o_ref: VMEM (BR, 128) f32
    w0 = w_ref[0]
    w1 = w_ref[1]
    bias = b_ref[0]
    # Pure VPU: two multiply-adds per vreg, lane-dense load/store. No MXU.
    o_ref[...] = x_ref[0] * w0 + x_ref[1] * w1 + bias


def linear_net_forward(x, w, b, *, block_rows=512):
    """Pallas equivalent of LinearNet.forward: y = x @ W^T + b.

    x: (N, F) float32 with F == 2   (PyTorch nn.Linear input layout)
    w: (F,)   float32               (flattened PyTorch weight of shape (1, F))
    b: (1,)   float32
    returns (N, 1) float32
    """
    n, f = x.shape
    assert f == 2, "kernel is specialized for num_input == 2"

    lanes = 128
    # Pad the batch so it maps onto full 128-lane rows; no divisibility assert.
    r = (n + lanes - 1) // lanes                 # number of 128-wide rows
    br = min(block_rows, r)                      # rows per grid step
    r_pad = ((r + br - 1) // br) * br            # full blocks only
    n_pad = r_pad * lanes

    x_pad = jnp.pad(x, ((0, n_pad - n), (0, 0)))
    # (N_pad, F) -> (F, N_pad) -> (F, R_pad, 128): feature-major, batch lane-dense.
    x_t = x_pad.T.reshape(f, r_pad, lanes)

    grid = (r_pad // br,)                        # 1 for small N, few steps otherwise

    out = pl.pallas_call(
        linear_kernel,
        out_shape=jax.ShapeDtypeStruct((r_pad, lanes), jnp.float32),
        grid=grid,
        in_specs=[
            # w, b as SMEM scalars: no VMEM tile padding, no extra DMA streams.
            pl.BlockSpec(memory_space=pltpu.MemorySpace.SMEM),
            pl.BlockSpec(memory_space=pltpu.MemorySpace.SMEM),
            pl.BlockSpec((f, br, lanes), lambda i: (0, i, 0)),
        ],
        out_specs=pl.BlockSpec((br, lanes), lambda i: (i, 0)),
        compiler_params=pltpu.CompilerParams(
            # Batch-row-block axis is embarrassingly parallel (v7x 2-TC split
            # when the grid has more than one step).
            dimension_semantics=("parallel",),
        ),
    )(w, b, x_t)

    # (R_pad, 128) -> flat batch order -> strip padding -> (N, 1)
    return out.reshape(n_pad)[:n].reshape(n, 1)


if __name__ == "__main__":
    key = jax.random.PRNGKey(0)
    k_x, k_w, k_b = jax.random.split(key, 3)

    num_examples = 16   # small batch for the demo (module used 1000)
    num_input = 2       # n_features = 2, matching LinearNet(num_input)

    # Deterministic synthetic input, features ~ N(0, 1).
    x = jax.random.normal(k_x, (num_examples, num_input), dtype=jnp.float32)

    # Parameters of nn.Linear(2, 1): weight (1, F) stored flattened as (F,), bias (1,).
    w = jax.random.normal(k_w, (num_input,), dtype=jnp.float32) * 0.1
    b = jax.random.normal(k_b, (1,), dtype=jnp.float32) * 0.1

    y = linear_net_forward(x, w, b)
    y = jax.block_until_ready(y)

    # Reference check against plain JAX (same semantics as nn.Linear forward).
    y_ref = x @ w.reshape(num_input, 1) + b.reshape(1, 1)
    assert y.shape == (num_examples, 1)
    assert jnp.allclose(y, y_ref, atol=1e-5, rtol=1e-5)

    print("KERNEL_OK")
</pallas_src>

<mosaic_0001>
module attributes {stable_mosaic.version = 11 : i64} {
  func.func @linear_kernel(%arg0: i32, %arg1: memref<2xf32, #tpu.memory_space<smem>>, %arg2: memref<1xf32, #tpu.memory_space<smem>>, %arg3: memref<2x1x128xf32, #tpu.memory_space<vmem>>, %arg4: memref<1x128xf32, #tpu.memory_space<vmem>>) attributes {dimension_semantics = [#tpu.dimension_semantics<parallel>], iteration_bounds = array<i64: 1>, scalar_prefetch = 0 : i64, scratch_operands = 0 : i64, tpu.core_type = #tpu.core_type<tc>, window_params = [{transform_indices = @transform_0, window_bounds = array<i64: 2>}, {transform_indices = @transform_1, window_bounds = array<i64: 1>}, {transform_indices = @transform_2, window_bounds = array<i64: 2, 1, 128>}, {transform_indices = @transform_3, window_bounds = array<i64: 1, 128>}]} {
    %c0 = arith.constant 0 : index
    %0 = memref.load %arg1[%c0] : memref<2xf32, #tpu.memory_space<smem>>
    %c1 = arith.constant 1 : index
    %1 = memref.load %arg1[%c1] : memref<2xf32, #tpu.memory_space<smem>>
    %c0_0 = arith.constant 0 : index
    %2 = memref.load %arg2[%c0_0] : memref<1xf32, #tpu.memory_space<smem>>
    %c0_1 = arith.constant 0 : index
    %c0_2 = arith.constant 0 : index
    %c0_3 = arith.constant 0 : index
    %3 = vector.load %arg3[%c0_1, %c0_2, %c0_3] : memref<2x1x128xf32, #tpu.memory_space<vmem>>, vector<1x1x128xf32>
    %4 = vector.shape_cast %3 : vector<1x1x128xf32> to vector<1x128xf32>
    %5 = vector.broadcast %0 : f32 to vector<1x128xf32>
    %6 = arith.mulf %4, %5 : vector<1x128xf32>
    %c1_4 = arith.constant 1 : index
    %c0_5 = arith.constant 0 : index
    %c0_6 = arith.constant 0 : index
    %7 = vector.load %arg3[%c1_4, %c0_5, %c0_6] : memref<2x1x128xf32, #tpu.memory_space<vmem>>, vector<1x1x128xf32>
    %8 = vector.shape_cast %7 : vector<1x1x128xf32> to vector<1x128xf32>
    %9 = vector.broadcast %1 : f32 to vector<1x128xf32>
    %10 = arith.mulf %8, %9 : vector<1x128xf32>
    %11 = arith.addf %6, %10 : vector<1x128xf32>
    %12 = vector.broadcast %2 : f32 to vector<1x128xf32>
    %13 = arith.addf %11, %12 : vector<1x128xf32>
    %c0_7 = arith.constant 0 : index
    %c0_8 = arith.constant 0 : index
    %14 = vector.load %arg4[%c0_7, %c0_8] : memref<1x128xf32, #tpu.memory_space<vmem>>, vector<1x128xf32>
    tpu.vector_store %arg4[%c0_7, %c0_8], %13 {strides = array<i32>} : memref<1x128xf32, #tpu.memory_space<vmem>>, vector<1x128xf32>,
    return
  }
  func.func @transform_0(%arg0: i32) -> i32 {
    %c0_i32 = arith.constant 0 : i32
    %c0_i32_0 = arith.constant 0 : i32
    return %c0_i32 : i32
  }
  func.func @transform_1(%arg0: i32) -> i32 {
    %c0_i32 = arith.constant 0 : i32
    %c0_i32_0 = arith.constant 0 : i32
    return %c0_i32 : i32
  }
  func.func @transform_2(%arg0: i32) -> (i32, i32, i32) {
    %c0_i32 = arith.constant 0 : i32
    %c0_i32_0 = arith.constant 0 : i32
    %c0_i32_1 = arith.constant 0 : i32
    return %c0_i32, %arg0, %c0_i32_0 : i32, i32, i32
  }
  func.func @transform_3(%arg0: i32) -> (i32, i32) {
    %c0_i32 = arith.constant 0 : i32
    %c0_i32_0 = arith.constant 0 : i32
    return %arg0, %c0_i32 : i32, i32
  }
}

</mosaic_0001>

<llo_original>
// kernel: tpu_custom_call.1
$region0: #{tpu_custom_call.1}
  #allocation0 [shape = 'u32[]', space=smem, size = 0x4, offset = 0x4, fixed_abs, tag = 'smem constant byte address 0x4 - core index']
  #allocation1 [shape = 'u32[144,128]{1,0:T(1,128)}', space=vmem, size = 0x12000, scoped, tag = 'internal scratch']
  #allocation2 [shape = 'f32[1]{0:T(128)S(6)}', space=smem, size = 0x200, scoped, tag = 'scoped memory for tpu_custom_call.1']
  %s0 = inlined_call_operand.vmem [shape: f32[2], index: 0, kind: input, shape index: {}]
  %s1 = inlined_call_operand.<no memory space> [shape: f32[1], index: 1, kind: input, shape index: {}]
  %s2 = inlined_call_operand.vmem [shape: f32[2,1,128], index: 2, kind: input, shape index: {}]
  %s3 = inlined_call_operand.hbm [shape: f32[1,128], index: 3, kind: output, shape index: {}]
  %s4 = sld [smem:[#allocation0]]
  $region26: #{tpu_custom_call.1} parent=0
    _
  %s6 = ssub.s32 1, %s4
  %s7 = scalar_select 0, %s6, %s4
  %8 = sst [smem:[#allocation2]] %s1
  $region1: #{tpu_custom_call.1} parent=0
    #allocation3 [shape = 'u8[512]{0}', space=smem, size = 0x200, scoped, tag = 'input window, operand 0, single buffered']
    #allocation4 [shape = 's32[1]{0}', space=sflag, size = 0x4, scoped, tag = 'scoped memory for tpu_custom_call.1']
    #allocation5 [shape = 's32[1]{0}', space=sflag, size = 0x4, scoped, tag = 'scoped memory for tpu_custom_call.1']
    #allocation6 [shape = 'u8[512]{0}', space=vmem, size = 0x400, scoped, tag = 'output window, operand 0, single buffered']
    %9 = vsyncpa [#allocation5], 0
    %10 = vsyncpa [#allocation4], 0
    // Predicated region
    $region2: #{tpu_custom_call.1} parent=1 // pred_check
      _
    $region3: #{tpu_custom_call.1} parent=1 // pred_check_branch
      %12 = sbr.rel (0) target = $region5
    $region4: #{tpu_custom_call.1} parent=1 // pred_region
      %s14 = ssub.s32 16, 16
      %15 = vsyncadd [#allocation5], %s14
      %s17 = sshll.u32 %s0, 4
      %s18 = int_to_ptr.vmem [resolvable:$true] %s17
      %20 = dma.vmem_to_smem %s18, 16, [#allocation3], [#allocation5]
    $region5: #{tpu_custom_call.1} parent=1 // pred_fallthru
      _
    // Predicated region
    $region6: #{tpu_custom_call.1} parent=1 // pred_check
      _
    $region7: #{tpu_custom_call.1} parent=1 // pred_check_branch
      %22 = sbr.rel (0) target = $region9
    $region8: #{tpu_custom_call.1} parent=1 // pred_region
      _
    $region9: #{tpu_custom_call.1} parent=1 // pred_fallthru
      _
    // Predicated region
    $region10: #{tpu_custom_call.1} parent=1 // pred_check
      _
    $region11: #{tpu_custom_call.1} parent=1 // pred_check_branch
      %24 = sbr.rel (0) target = $region13
    $region12: #{tpu_custom_call.1} parent=1 // pred_region
      _
    $region13: #{tpu_custom_call.1} parent=1 // pred_fallthru
      _
    // Predicated region
    $region14: #{tpu_custom_call.1} parent=1 // pred_check
      _
    $region15: #{tpu_custom_call.1} parent=1 // pred_check_branch
      %26 = sbr.rel (0) target = $region17
    $region16: #{tpu_custom_call.1} parent=1 // pred_region
      %27 = dma.done [#allocation5], 16
    $region17: #{tpu_custom_call.1} parent=1 // pred_fallthru
      _
    %28 = sfence
    %s29 = sld [smem:[#allocation3]]
    %s30 = sld [smem:[#allocation3 + $0x1]]
    %s31 = sld [smem:[#allocation2]]
    %v32 = vld [vmem:[%s2] sm:$0x1]
    %v33 = vstv %s29
    %v34 = vmul.f32 %v32, %v33
    %s35 = scalar_lea.vmem %s2, 1
    %v36 = vld [vmem:[%s35] sm:$0x1]
    %v37 = vstv %s30
    %v38 = vmul.f32 %v36, %v37
    %v39 = vadd.f32 %v34, %v38
    %v40 = vstv %s31
    %v41 = vadd.f32 %v39, %v40
    %42 = vst [vmem:[#allocation6] sm:$0x1] %v41
    // Predicated region
    $region18: #{tpu_custom_call.1} parent=1 // pred_check
      _
    $region19: #{tpu_custom_call.1} parent=1 // pred_check_branch
      %44 = sbr.rel (0) target = $region21
    $region20: #{tpu_custom_call.1} parent=1 // pred_region
      %s46 = ssub.s32 16, 16
      %47 = vsyncadd [#allocation4], %s46
      %s49 = sshll.u32 [#allocation6], 4
      %s50 = int_to_ptr.vmem [resolvable:$true] %s49
      %52 = dma.vmem_to_hbm [thread:$0]  %s50, 16, %s3, [#allocation4]
    $region21: #{tpu_custom_call.1} parent=1 // pred_fallthru
      _
    // Predicated region
    $region22: #{tpu_custom_call.1} parent=1 // pred_check
      _
    $region23: #{tpu_custom_call.1} parent=1 // pred_check_branch
      %54 = sbr.rel (0) target = $region25
    $region24: #{tpu_custom_call.1} parent=1 // pred_region
      %55 = dma.done [#allocation4], 16
    $region25: #{tpu_custom_call.1} parent=1 // pred_fallthru
      _
    %56 = vsyncpa [#allocation4], 1
    %57 = vsyncpa [#allocation5], 1

</llo_original>
